<compile_context>
chip_gen: v6e
topology: v6e:2x2x1
jax: 0.10.0
libtpu: 0.0.40
codegen_flags: <defaults>
</compile_context>

<pallas_src>
import functools
from typing import NamedTuple

import jax
import jax.numpy as jnp
from jax import lax
from jax.experimental import pallas as pl
from jax.experimental.pallas import tpu as pltpu


def _round_up(x, m):
    return ((x + m - 1) // m) * m


def _vmem_capacity_bytes():
    try:
        return int(pltpu.get_tpu_info().vmem_capacity_bytes)
    except Exception:
        return 64 * 1024 * 1024  # conservative (v7x per-TC)


class ProjectorPlan(NamedTuple):
    B: int
    F: int
    L: int
    Bp: int
    Fp: int
    Lp: int
    tm: int
    tn: int
    th: int
    vmem_limit: int


def make_projector_plan(B, F, L, x_dtype=jnp.float32):
    """Choose padded dims / tiles once, per (B, F, L, dtype) and TPU generation."""
    cap = _vmem_capacity_bytes()
    # Leave compiler headroom: ~48 MiB on v7x (64 MiB physical), ~96 MiB on
    # v5e/v6e (128 MiB physical).
    vmem_cap = min((3 * cap) // 4, 100 * 1024 * 1024)
    fit_budget = vmem_cap // 2

    x_isize = jnp.dtype(x_dtype).itemsize
    out_isize = x_isize

    Fp_min = _round_up(F, 128)
    Lp_min = _round_up(L, 128)

    # Latent tiling: collapse the j axis whenever the latent dim is modest so
    # relu(x @ W1^T) is never recomputed per latent tile.
    tn = Lp_min if Lp_min <= 1024 else 256

    # Batch-row tiling: 16-aligned for bf16 packing; prefer big tiles but keep
    # >= 2 tiles on the parallel axis when B allows it (v7x has 2 TCs).
    B16 = _round_up(B, 16)
    if B16 <= 128:
        tm_cands = [B16]
    elif B16 <= 1024:
        tm_cands = [128, 64, 32, 16]
    else:
        tm_cands = [256, 128, 64, 32, 16]

    # Hidden tiling (rows of W1 / reduction of the 2nd matmul): prefer full
    # residency (weights DMA'd once and kept in VMEM), else 256-friendly tiles.
    th_cands = ([Fp_min] if Fp_min <= 2048 else []) + [
        t for t in (512, 256, 128) if t < Fp_min
    ]

    chosen = None
    for tm in tm_cands:
        for th in th_cands:
            Fp = _round_up(F, th)
            Lp = _round_up(L, tn)
            num_j = Lp // tn
            need = (
                2 * tm * Fp * x_isize            # x tile (double-buffered)
                + 2 * th * Fp * 2                # W1 tile (bf16)
                + 2 * tn * th * 2                # W2 tile (bf16)
                + 2 * tm * tn * out_isize        # output tile
                + (tm * tn * 4 if out_isize != 4 else 0)   # f32 accumulator
                + (tm * Fp * 2 if num_j > 1 else 0)        # hidden-reuse scratch
            )
            if need <= fit_budget:
                chosen = (tm, th, Fp, Lp, need)
                break
        if chosen is not None:
            break
    if chosen is None:  # last resort: smallest tiles, accept the budget as-is
        tm, th = tm_cands[-1], min(th_cands)
        Fp, Lp = _round_up(F, th), _round_up(L, tn)
        chosen = (tm, th, Fp, Lp, fit_budget)

    tm, th, Fp, Lp, need = chosen
    Bp = _round_up(B, tm)
    vmem_limit = int(min(max(2 * need, 16 * 1024 * 1024), vmem_cap))
    return ProjectorPlan(B=B, F=F, L=L, Bp=Bp, Fp=Fp, Lp=Lp,
                         tm=tm, tn=tn, th=th, vmem_limit=vmem_limit)


def prepare_projector_weights(plan, w1, w2):
    """Pad torch-[out, in] weights to the plan's tile grid and cast to bf16.
    Run ONCE per weight set, outside the per-step path (perf review #2)."""
    F, L, Fp, Lp = plan.F, plan.L, plan.Fp, plan.Lp
    w1p = jnp.pad(w1, ((0, Fp - F), (0, Fp - F))).astype(jnp.bfloat16)
    w2p = jnp.pad(w2, ((0, Lp - L), (0, Fp - F))).astype(jnp.bfloat16)
    return w1p, w2p


def _make_projector_kernel(multi_j: bool, out_is_f32: bool, th: int):
    """Kernel over grid (i: batch rows, j: latent tiles, h: hidden tiles)."""

    def kernel(x_ref, w1_ref, w2_ref, o_ref, *scratch):
        h_idx = pl.program_id(2)
        j_idx = pl.program_id(1)

        if out_is_f32:
            # Output block index ignores h, so o_ref is resident across the
            # reduction: accumulate directly into it (no scratch / final copy).
            acc_ref, rest = o_ref, scratch
        else:
            acc_ref, rest = scratch[0], scratch[1:]
        h_scr = rest[0] if multi_j else None

        @pl.when(h_idx == 0)
        def _():
            acc_ref[...] = jnp.zeros_like(acc_ref)

        # Contract the `in` axis of torch [out, in] weights: x @ W^T with no
        # materialized transpose; bf16 MXU operands, f32 accumulation.
        dn = (((1,), (1,)), ((), ()))

        def hidden_tile():
            h = lax.dot_general(
                x_ref[...].astype(jnp.bfloat16), w1_ref[...],
                dimension_numbers=dn, preferred_element_type=jnp.float32)
            return jnp.maximum(h, 0.0).astype(jnp.bfloat16)  # ReLU on f32 acc

        if multi_j:
            # Compute the (tm, th) hidden tile once per (i, h) on the first
            # latent tile, cache it in VMEM, and reuse it for every j tile.
            off = pl.multiple_of(h_idx * th, 128)

            @pl.when(j_idx == 0)
            def _():
                h_scr[:, pl.ds(off, th)] = hidden_tile()

            h_t = h_scr[:, pl.ds(off, th)]
        else:
            h_t = hidden_tile()

        acc_ref[...] += lax.dot_general(
            h_t, w2_ref[...], dimension_numbers=dn,
            preferred_element_type=jnp.float32)

        if not out_is_f32:
            @pl.when(h_idx == pl.num_programs(2) - 1)
            def _():
                o_ref[...] = acc_ref[...].astype(o_ref.dtype)

    return kernel


def projector_forward(plan, x, w1p, w2p):
    """x: [B, F] float; w1p/w2p: bf16 padded weights from
    prepare_projector_weights. Returns [B, L] in x.dtype."""
    B, F, L = plan.B, plan.F, plan.L
    Bp, Fp, Lp = plan.Bp, plan.Fp, plan.Lp
    tm, tn, th = plan.tm, plan.tn, plan.th
    assert x.shape == (B, F)
    assert w1p.shape == (Fp, Fp) and w2p.shape == (Lp, Fp)

    # Pad x only when required; unpadded activations are streamed in their
    # original dtype and cast to bf16 in-kernel (saves one HBM pass).
    if (B, F) == (Bp, Fp):
        xp = x
    else:
        xp = jnp.pad(x, ((0, Bp - B), (0, Fp - F))).astype(jnp.bfloat16)

    num_i, num_j, num_h = Bp // tm, Lp // tn, Fp // th
    out_dtype = x.dtype
    out_is_f32 = jnp.dtype(out_dtype) == jnp.float32
    multi_j = num_j > 1

    scratch_shapes = []
    if not out_is_f32:
        scratch_shapes.append(pltpu.VMEM((tm, tn), jnp.float32))
    if multi_j:
        scratch_shapes.append(pltpu.VMEM((tm, Fp), jnp.bfloat16))

    # Honest cost estimate: the hidden matmul runs once per (i, h); weight HBM
    # reads reflect re-streaming whenever they are not fully VMEM-resident.
    flops = 2 * Bp * Fp * Fp + 2 * Bp * Fp * Lp
    w1_reads = 1 if num_h == 1 else num_i * num_j
    w2_reads = 1 if (num_h == 1 and num_j == 1) else num_i
    bytes_accessed = int(
        xp.size * xp.dtype.itemsize
        + w1_reads * w1p.size * 2
        + w2_reads * w2p.size * 2
        + Bp * Lp * jnp.dtype(out_dtype).itemsize)
    cost = pl.CostEstimate(flops=int(flops), transcendentals=0,
                           bytes_accessed=bytes_accessed)

    kernel = _make_projector_kernel(multi_j, out_is_f32, th)

    out_p = pl.pallas_call(
        kernel,
        out_shape=jax.ShapeDtypeStruct((Bp, Lp), out_dtype),
        grid_spec=pltpu.PrefetchScalarGridSpec(
            num_scalar_prefetch=0,
            grid=(num_i, num_j, num_h),
            in_specs=[
                pl.BlockSpec((tm, Fp), lambda i, j, h: (i, 0)),   # x row tile
                pl.BlockSpec((th, Fp), lambda i, j, h: (h, 0)),   # W1 rows (resident if num_h==1)
                pl.BlockSpec((tn, th), lambda i, j, h: (j, h)),   # W2 tile  (resident if num_j==num_h==1)
            ],
            out_specs=pl.BlockSpec((tm, tn), lambda i, j, h: (i, j)),
            scratch_shapes=scratch_shapes,
        ),
        compiler_params=pltpu.CompilerParams(
            # hidden-reuse scratch + the reduction require j/h on one core;
            # the batch axis is megacore-parallel.
            dimension_semantics=("parallel", "arbitrary", "arbitrary"),
            vmem_limit_bytes=plan.vmem_limit,
        ),
        cost_estimate=cost,
    )(xp, w1p, w2p)

    return out_p[:B, :L]


if __name__ == "__main__":
    # Small deterministic setup consistent with the module:
    #   Projector(num_feature=32, num_latent=16), batch=8.
    B, num_feature, num_latent = 8, 32, 16

    key = jax.random.PRNGKey(0)
    kx, k1, k2 = jax.random.split(key, 3)

    x = jax.random.normal(kx, (B, num_feature), dtype=jnp.float32)
    # torch nn.Linear weight shape is (out_features, in_features)
    w1 = jax.random.normal(k1, (num_feature, num_feature), dtype=jnp.float32) * 0.1
    w2 = jax.random.normal(k2, (num_latent, num_feature), dtype=jnp.float32) * 0.1

    plan = make_projector_plan(B, num_feature, num_latent, x.dtype)
    # One-time weight prep (pad + bf16 cast), hoisted out of the per-call path.
    w1p, w2p = jax.block_until_ready(prepare_projector_weights(plan, w1, w2))

    fwd = jax.jit(functools.partial(projector_forward, plan))
    out = jax.block_until_ready(fwd(x, w1p, w2p))
    assert out.shape == (B, num_latent), out.shape

    # Tight check vs a bf16-operand / f32-accumulate reference (kernel's math).
    xb, w1b, w2b = (a.astype(jnp.bfloat16) for a in (x, w1, w2))
    dn = (((1,), (1,)), ((), ()))
    h_ref = jnp.maximum(
        lax.dot_general(xb, w1b, dn, preferred_element_type=jnp.float32), 0.0)
    ref_bf16 = lax.dot_general(h_ref.astype(jnp.bfloat16), w2b, dn,
                               preferred_element_type=jnp.float32)
    assert jnp.allclose(out, ref_bf16, atol=2e-4, rtol=2e-4), "mismatch vs bf16 reference"

    # Loose check vs the exact f32 PyTorch semantics (bf16 MXU rounding only).
    ref_f32 = jnp.maximum(x @ w1.T, 0.0) @ w2.T
    assert jnp.allclose(out, ref_f32, atol=5e-2, rtol=5e-2), "mismatch vs f32 reference"

    print("KERNEL_OK")
</pallas_src>

<mosaic_0001>
module attributes {stable_mosaic.version = 11 : i64} {
  func.func @kernel(%arg0: i32, %arg1: i32, %arg2: i32, %arg3: memref<16x128xbf16, #tpu.memory_space<vmem>>, %arg4: memref<128x128xbf16, #tpu.memory_space<vmem>>, %arg5: memref<128x128xbf16, #tpu.memory_space<vmem>>, %arg6: memref<16x128xf32, #tpu.memory_space<vmem>>) attributes {dimension_semantics = [#tpu.dimension_semantics<parallel>, #tpu.dimension_semantics<arbitrary>, #tpu.dimension_semantics<arbitrary>], iteration_bounds = array<i64: 1, 1, 1>, scalar_prefetch = 0 : i64, scratch_operands = 0 : i64, tpu.core_type = #tpu.core_type<tc>, window_params = [{transform_indices = @transform_0, window_bounds = array<i64: 16, 128>}, {transform_indices = @transform_1, window_bounds = array<i64: 128, 128>}, {transform_indices = @transform_2, window_bounds = array<i64: 128, 128>}, {transform_indices = @transform_3, window_bounds = array<i64: 16, 128>}]} {
    %c0_i32 = arith.constant 0 : i32
    %0 = arith.cmpi eq, %arg2, %c0_i32 : i32
    %1 = arith.extui %0 : i1 to i32
    %c0_i32_0 = arith.constant 0 : i32
    %2 = arith.cmpi ne, %1, %c0_i32_0 : i32
    scf.if %2 {
      %cst_12 = arith.constant 0.000000e+00 : f32
      %14 = vector.broadcast %cst_12 : f32 to vector<16x128xf32>
      %c0_13 = arith.constant 0 : index
      %c0_14 = arith.constant 0 : index
      %15 = vector.load %arg6[%c0_13, %c0_14] : memref<16x128xf32, #tpu.memory_space<vmem>>, vector<16x128xf32>
      tpu.vector_store %arg6[%c0_13, %c0_14], %14 {strides = array<i32>} : memref<16x128xf32, #tpu.memory_space<vmem>>, vector<16x128xf32>,
    } else {
    }
    %c0 = arith.constant 0 : index
    %c0_1 = arith.constant 0 : index
    %3 = vector.load %arg3[%c0, %c0_1] : memref<16x128xbf16, #tpu.memory_space<vmem>>, vector<16x128xbf16>
    %c0_2 = arith.constant 0 : index
    %c0_3 = arith.constant 0 : index
    %4 = vector.load %arg4[%c0_2, %c0_3] : memref<128x128xbf16, #tpu.memory_space<vmem>>, vector<128x128xbf16>
    %cst = arith.constant dense<0.000000e+00> : vector<16x128xf32>
    %5 = tpu.matmul %3, %4, %cst {dimension_numbers = #tpu.dot_dimension_numbers<[1], [1], [0], [0], [0, 0, 1, 0], [], []>} : vector<16x128xbf16>, vector<128x128xbf16>, vector<16x128xf32> -> vector<16x128xf32>
    %cst_4 = arith.constant 0.000000e+00 : f32
    %6 = vector.broadcast %cst_4 : f32 to vector<16x128xf32>
    %7 = arith.maximumf %5, %6 : vector<16x128xf32>
    %8 = arith.truncf %7 : vector<16x128xf32> to vector<16x128xbf16>
    %c0_5 = arith.constant 0 : index
    %c0_6 = arith.constant 0 : index
    %9 = vector.load %arg6[%c0_5, %c0_6] : memref<16x128xf32, #tpu.memory_space<vmem>>, vector<16x128xf32>
    %c0_7 = arith.constant 0 : index
    %c0_8 = arith.constant 0 : index
    %10 = vector.load %arg5[%c0_7, %c0_8] : memref<128x128xbf16, #tpu.memory_space<vmem>>, vector<128x128xbf16>
    %cst_9 = arith.constant dense<0.000000e+00> : vector<16x128xf32>
    %11 = tpu.matmul %8, %10, %cst_9 {dimension_numbers = #tpu.dot_dimension_numbers<[1], [1], [0], [0], [0, 0, 1, 0], [], []>} : vector<16x128xbf16>, vector<128x128xbf16>, vector<16x128xf32> -> vector<16x128xf32>
    %12 = arith.addf %9, %11 : vector<16x128xf32>
    %c0_10 = arith.constant 0 : index
    %c0_11 = arith.constant 0 : index
    %13 = vector.load %arg6[%c0_10, %c0_11] : memref<16x128xf32, #tpu.memory_space<vmem>>, vector<16x128xf32>
    tpu.vector_store %arg6[%c0_10, %c0_11], %12 {strides = array<i32>} : memref<16x128xf32, #tpu.memory_space<vmem>>, vector<16x128xf32>,
    return
  }
  func.func @transform_0(%arg0: i32, %arg1: i32, %arg2: i32) -> (i32, i32) {
    %c0_i32 = arith.constant 0 : i32
    %c0_i32_0 = arith.constant 0 : i32
    return %arg0, %c0_i32 : i32, i32
  }
  func.func @transform_1(%arg0: i32, %arg1: i32, %arg2: i32) -> (i32, i32) {
    %c0_i32 = arith.constant 0 : i32
    %c0_i32_0 = arith.constant 0 : i32
    return %arg2, %c0_i32 : i32, i32
  }
  func.func @transform_2(%arg0: i32, %arg1: i32, %arg2: i32) -> (i32, i32) {
    %c0_i32 = arith.constant 0 : i32
    return %arg1, %arg2 : i32, i32
  }
  func.func @transform_3(%arg0: i32, %arg1: i32, %arg2: i32) -> (i32, i32) {
    %c0_i32 = arith.constant 0 : i32
    return %arg0, %arg1 : i32, i32
  }
}

</mosaic_0001>

<llo_original>
// kernel: projector_forward.1
$region0: #{projector_forward.1}
  #allocation0 [shape = 'u32[]', space=smem, size = 0x4, offset = 0x4, fixed_abs, tag = 'smem constant byte address 0x4 - core index']
  #allocation1 [shape = 'u32[144,128]{1,0:T(1,128)}', space=vmem, size = 0x12000, scoped, tag = 'internal scratch']
  %s0 = inlined_call_operand.vmem [shape: bf16[16,128], index: 0, kind: input, shape index: {}]
  %s1 = inlined_call_operand.hbm [shape: bf16[128,128], index: 1, kind: input, shape index: {}]
  %s2 = inlined_call_operand.hbm [shape: bf16[128,128], index: 2, kind: input, shape index: {}]
  %s3 = inlined_call_operand.vmem [shape: f32[16,128], index: 3, kind: output, shape index: {}]
  %s4 = sld [smem:[#allocation0]]
  $region34: #{projector_forward.1} parent=0
    _
  %s6 = ssub.s32 1, %s4
  %s7 = scalar_select 0, %s6, %s4
  $region1: #{projector_forward.1} parent=0
    #allocation2 [shape = 'u8[32768]{0}', space=vmem, size = 0x8000, scoped, tag = 'input window, operand 1, single buffered']
    #allocation3 [shape = 's32[1]{0}', space=sflag, size = 0x4, scoped, tag = 'scoped memory for projector_forward.1']
    #allocation4 [shape = 'u8[32768]{0}', space=vmem, size = 0x8000, scoped, tag = 'input window, operand 2, single buffered']
    #allocation5 [shape = 's32[1]{0}', space=sflag, size = 0x4, scoped, tag = 'scoped memory for projector_forward.1']
    %8 = vsyncpa [#allocation3], 0
    %9 = vsyncpa [#allocation5], 0
    // Predicated region
    $region2: #{projector_forward.1} parent=1 // pred_check
      _
    $region3: #{projector_forward.1} parent=1 // pred_check_branch
      %11 = sbr.rel (0) target = $region5
    $region4: #{projector_forward.1} parent=1 // pred_region
      _
    $region5: #{projector_forward.1} parent=1 // pred_fallthru
      _
    // Predicated region
    $region6: #{projector_forward.1} parent=1 // pred_check
      _
    $region7: #{projector_forward.1} parent=1 // pred_check_branch
      %13 = sbr.rel (0) target = $region9
    $region8: #{projector_forward.1} parent=1 // pred_region
      %s15 = ssub.s32 1024, 1024
      %16 = vsyncadd [#allocation3], %s15
      %s17 = sshll.u32 [#allocation2], 4
      %s18 = int_to_ptr.vmem [resolvable:$true] %s17
      %23 = dma.hbm_to_vmem [thread:$0]  %s1, 1024, %s18, [#allocation3], 64, 64, 4
    $region9: #{projector_forward.1} parent=1 // pred_fallthru
      _
    // Predicated region
    $region10: #{projector_forward.1} parent=1 // pred_check
      _
    $region11: #{projector_forward.1} parent=1 // pred_check_branch
      %25 = sbr.rel (0) target = $region13
    $region12: #{projector_forward.1} parent=1 // pred_region
      %s27 = ssub.s32 1024, 1024
      %28 = vsyncadd [#allocation5], %s27
      %s29 = sshll.u32 [#allocation4], 4
      %s30 = int_to_ptr.vmem [resolvable:$true] %s29
      %35 = dma.hbm_to_vmem [thread:$0]  %s2, 1024, %s30, [#allocation5], 64, 64, 4
    $region13: #{projector_forward.1} parent=1 // pred_fallthru
      _
    // Predicated region
    $region14: #{projector_forward.1} parent=1 // pred_check
      _
    $region15: #{projector_forward.1} parent=1 // pred_check_branch
      %37 = sbr.rel (0) target = $region17
    $region16: #{projector_forward.1} parent=1 // pred_region
      %38 = dma.done [#allocation3], 1024
    $region17: #{projector_forward.1} parent=1 // pred_fallthru
      _
    // Predicated region
    $region18: #{projector_forward.1} parent=1 // pred_check
      _
    $region19: #{projector_forward.1} parent=1 // pred_check_branch
      %40 = sbr.rel (0) target = $region21
    $region20: #{projector_forward.1} parent=1 // pred_region
      %41 = dma.done [#allocation5], 1024
    $region21: #{projector_forward.1} parent=1 // pred_fallthru
      _
    %p43 = scmp.eq.s32.totalorder 0, 0
    // Predicated region
    $region22: #{projector_forward.1} parent=1 // pred_check
      %p44 = pneg %p43
    $region23: #{projector_forward.1} parent=1 // pred_check_branch
      %46 = sbr.rel (%p44) target = $region25
    $region24: #{projector_forward.1} parent=1 // pred_region
      %47 = vst [vmem:[%s3] sm:$0xff] 0.0
      %48 = vst [vmem:[%s3 + $0x8] sm:$0xff] 0.0
    $region25: #{projector_forward.1} parent=1 // pred_fallthru
      _
    %v49 = vld [vmem:[%s0] sm:$0xf]
    %v50 = vld [vmem:[%s0 + $0x4] sm:$0xf]
    %v51 = vld [vmem:[#allocation2] sm:$0xf]
    %v52 = vld [vmem:[#allocation2 + $0x4] sm:$0xf]
    %v53 = vld [vmem:[#allocation2 + $0x8] sm:$0xf]
    %v54 = vld [vmem:[#allocation2 + $0xc] sm:$0xf]
    %v55 = vld [vmem:[#allocation2 + $0x10] sm:$0xf]
    %v56 = vld [vmem:[#allocation2 + $0x14] sm:$0xf]
    %v57 = vld [vmem:[#allocation2 + $0x18] sm:$0xf]
    %v58 = vld [vmem:[#allocation2 + $0x1c] sm:$0xf]
    %v59 = vld [vmem:[#allocation2 + $0x20] sm:$0xf]
    %v60 = vld [vmem:[#allocation2 + $0x24] sm:$0xf]
    %v61 = vld [vmem:[#allocation2 + $0x28] sm:$0xf]
    %v62 = vld [vmem:[#allocation2 + $0x2c] sm:$0xf]
    %v63 = vld [vmem:[#allocation2 + $0x30] sm:$0xf]
    %v64 = vld [vmem:[#allocation2 + $0x34] sm:$0xf]
    %v65 = vld [vmem:[#allocation2 + $0x38] sm:$0xf]
    %v66 = vld [vmem:[#allocation2 + $0x3c] sm:$0xf]
    %v69 = vunpack.c.l.b16 %v49
    %v70 = vunpack.c.l.b16 %v50
    %v71 = vpack.c.b16 %v70, %v69
    %v89 = vunpack.c.l.b16 %v51
    %v90 = vunpack.c.l.b16 %v52
    %v91 = vunpack.c.l.b16 %v53
    %v92 = vunpack.c.l.b16 %v54
    %v93 = vunpack.c.l.b16 %v55
    %v94 = vunpack.c.l.b16 %v56
    %v95 = vunpack.c.l.b16 %v57
    %v96 = vunpack.c.l.b16 %v58
    %v97 = vunpack.c.l.b16 %v59
    %v98 = vunpack.c.l.b16 %v60
    %v99 = vunpack.c.l.b16 %v61
    %v100 = vunpack.c.l.b16 %v62
    %v101 = vunpack.c.l.b16 %v63
    %v102 = vunpack.c.l.b16 %v64
    %v103 = vunpack.c.l.b16 %v65
    %v104 = vunpack.c.l.b16 %v66
    %v105 = vpack.c.b16 %v90, %v89
    %v106 = vpack.c.b16 %v92, %v91
    %v107 = vpack.c.b16 %v94, %v93
    %v108 = vpack.c.b16 %v96, %v95
    %v109 = vpack.c.b16 %v98, %v97
    %v110 = vpack.c.b16 %v100, %v99
    %v111 = vpack.c.b16 %v102, %v101
    %v112 = vpack.c.b16 %v104, %v103
    %121 = vmatprep.subr.bf16.mxu0 0
    %122 = vmatpush1.bf16.xpose.msra.mxu0 %v112
    %123 = vmatprep.subr.bf16.mxu0 0
    %124 = vmatpush1.bf16.xpose.msra.mxu0 %v111
    %125 = vmatprep.subr.bf16.mxu0 0
    %126 = vmatpush1.bf16.xpose.msra.mxu0 %v110
    %127 = vmatprep.subr.bf16.mxu0 0
    %128 = vmatpush1.bf16.xpose.msra.mxu0 %v109
    %129 = vmatprep.subr.bf16.mxu0 0
    %130 = vmatpush1.bf16.xpose.msra.mxu0 %v108
    %131 = vmatprep.subr.bf16.mxu0 0
    %132 = vmatpush1.bf16.xpose.msra.mxu0 %v107
    %133 = vmatprep.subr.bf16.mxu0 0
    %134 = vmatpush1.bf16.xpose.msra.mxu0 %v106
    %135 = vmatprep.subr.bf16.mxu0 0
    %136 = vmatpush1.bf16.xpose.msra.mxu0 %v105
    %137 = vmatprep.subr.bf16.mxu0 0
    %138 = vmatpush2.bf16.xpose.msra.mxu0 0
    %139 = vmatprep.subr.bf16.mxu0 0
    %140 = vmatpush2.bf16.xpose.msra.mxu0 0
    %141 = vmatprep.subr.bf16.mxu0 0
    %142 = vmatpush2.bf16.xpose.msra.mxu0 0
    %143 = vmatprep.subr.bf16.mxu0 0
    %144 = vmatpush2.bf16.xpose.msra.mxu0 0
    %145 = vmatprep.subr.bf16.mxu0 0
    %146 = vmatpush2.bf16.xpose.msra.mxu0 0
    %147 = vmatprep.subr.bf16.mxu0 0
    %148 = vmatpush2.bf16.xpose.msra.mxu0 0
    %149 = vmatprep.subr.bf16.mxu0 0
    %150 = vmatpush2.bf16.xpose.msra.mxu0 0
    %151 = vmatprep.subr.bf16.mxu0 0
    %152 = vmatpush2.bf16.xpose.msra.mxu0 0
    %153 = vmatprep.mubr.bf16.mxu0 0
    %154 = vmatmul.mubr.bf16.gmra.mxu0 %v71
    %v155 = vpop.f32.mrf.mxu0
    %v156 = vadd.f32 0.0, %v155
    %v157 = vpop.f32.mrf.mxu0
    %v158 = vpop.f32.mrf.mxu0
    %v159 = vadd.f32 0.0, %v158
    %v160 = vpop.f32.mrf.mxu0
    %161 = vdwg.mxu0
    %v162 = vmax.f32 %v156, 0.0
    %v163 = vmax.f32 %v159, 0.0
    %v164 = vpack.c.bf16 %v163, %v162
    %v165 = vld [vmem:[%s3] sm:$0xff]
    %v166 = vld [vmem:[%s3 + $0x8] sm:$0xff]
    %v167 = vld [vmem:[#allocation4] sm:$0xf]
    %v168 = vld [vmem:[#allocation4 + $0x4] sm:$0xf]
    %v169 = vld [vmem:[#allocation4 + $0x8] sm:$0xf]
    %v170 = vld [vmem:[#allocation4 + $0xc] sm:$0xf]
    %v171 = vld [vmem:[#allocation4 + $0x10] sm:$0xf]
    %v172 = vld [vmem:[#allocation4 + $0x14] sm:$0xf]
    %v173 = vld [vmem:[#allocation4 + $0x18] sm:$0xf]
    %v174 = vld [vmem:[#allocation4 + $0x1c] sm:$0xf]
    %v175 = vld [vmem:[#allocation4 + $0x20] sm:$0xf]
    %v176 = vld [vmem:[#allocation4 + $0x24] sm:$0xf]
    %v177 = vld [vmem:[#allocation4 + $0x28] sm:$0xf]
    %v178 = vld [vmem:[#allocation4 + $0x2c] sm:$0xf]
    %v179 = vld [vmem:[#allocation4 + $0x30] sm:$0xf]
    %v180 = vld [vmem:[#allocation4 + $0x34] sm:$0xf]
    %v181 = vld [vmem:[#allocation4 + $0x38] sm:$0xf]
    %v182 = vld [vmem:[#allocation4 + $0x3c] sm:$0xf]
    %v199 = vunpack.c.l.b16 %v167
    %v200 = vunpack.c.l.b16 %v168
    %v201 = vunpack.c.l.b16 %v169
    %v202 = vunpack.c.l.b16 %v170
    %v203 = vunpack.c.l.b16 %v171
    %v204 = vunpack.c.l.b16 %v172
    %v205 = vunpack.c.l.b16 %v173
    %v206 = vunpack.c.l.b16 %v174
    %v207 = vunpack.c.l.b16 %v175
    %v208 = vunpack.c.l.b16 %v176
    %v209 = vunpack.c.l.b16 %v177
    %v210 = vunpack.c.l.b16 %v178
    %v211 = vunpack.c.l.b16 %v179
    %v212 = vunpack.c.l.b16 %v180
    %v213 = vunpack.c.l.b16 %v181
    %v214 = vunpack.c.l.b16 %v182
    %v215 = vpack.c.b16 %v200, %v199
    %v216 = vpack.c.b16 %v202, %v201
    %v217 = vpack.c.b16 %v204, %v203
    %v218 = vpack.c.b16 %v206, %v205
    %v219 = vpack.c.b16 %v208, %v207
    %v220 = vpack.c.b16 %v210, %v209
    %v221 = vpack.c.b16 %v212, %v211
    %v222 = vpack.c.b16 %v214, %v213
    %231 = vmatprep.subr.bf16.mxu0 0
    %232 = vmatpush1.bf16.xpose.msra.mxu0 %v222
    %233 = vmatprep.subr.bf16.mxu0 0
    %234 = vmatpush1.bf16.xpose.msra.mxu0 %v221
    %235 = vmatprep.subr.bf16.mxu0 0
    %236 = vmatpush1.bf16.xpose.msra.mxu0 %v220
    %237 = vmatprep.subr.bf16.mxu0 0
    %238 = vmatpush1.bf16.xpose.msra.mxu0 %v219
    %239 = vmatprep.subr.bf16.mxu0 0
    %240 = vmatpush1.bf16.xpose.msra.mxu0 %v218
    %241 = vmatprep.subr.bf16.mxu0 0
    %242 = vmatpush1.bf16.xpose.msra.mxu0 %v217
    %243 = vmatprep.subr.bf16.mxu0 0
    %244 = vmatpush1.bf16.xpose.msra.mxu0 %v216
    %245 = vmatprep.subr.bf16.mxu0 0
    %246 = vmatpush1.bf16.xpose.msra.mxu0 %v215
    %247 = vmatprep.subr.bf16.mxu0 0
    %248 = vmatpush2.bf16.xpose.msra.mxu0 0
    %249 = vmatprep.subr.bf16.mxu0 0
    %250 = vmatpush2.bf16.xpose.msra.mxu0 0
    %251 = vmatprep.subr.bf16.mxu0 0
    %252 = vmatpush2.bf16.xpose.msra.mxu0 0
    %253 = vmatprep.subr.bf16.mxu0 0
    %254 = vmatpush2.bf16.xpose.msra.mxu0 0
    %255 = vmatprep.subr.bf16.mxu0 0
    %256 = vmatpush2.bf16.xpose.msra.mxu0 0
    %257 = vmatprep.subr.bf16.mxu0 0
    %258 = vmatpush2.bf16.xpose.msra.mxu0 0
    %259 = vmatprep.subr.bf16.mxu0 0
    %260 = vmatpush2.bf16.xpose.msra.mxu0 0
    %261 = vmatprep.subr.bf16.mxu0 0
    %262 = vmatpush2.bf16.xpose.msra.mxu0 0
    %263 = vmatprep.mubr.bf16.mxu0 0
    %264 = vmatmul.mubr.bf16.gmra.mxu0 %v164
    %v265 = vpop.f32.mrf.mxu0
    %v266 = vadd.f32 0.0, %v265
    %v267 = vpop.f32.mrf.mxu0
    %v268 = vpop.f32.mrf.mxu0
    %v269 = vadd.f32 0.0, %v268
    %v270 = vpop.f32.mrf.mxu0
    %271 = vdwg.mxu0
    %v272 = vadd.f32 %v165, %v266
    %v273 = vadd.f32 %v166, %v269
    %274 = vst [vmem:[%s3] sm:$0xff] %v272
    %275 = vst [vmem:[%s3 + $0x8] sm:$0xff] %v273
    // Predicated region
    $region26: #{projector_forward.1} parent=1 // pred_check
      _
    $region27: #{projector_forward.1} parent=1 // pred_check_branch
      %277 = sbr.rel (0) target = $region29
    $region28: #{projector_forward.1} parent=1 // pred_region
      _
    $region29: #{projector_forward.1} parent=1 // pred_fallthru
      _
    // Predicated region
    $region30: #{projector_forward.1} parent=1 // pred_check
      _
    $region31: #{projector_forward.1} parent=1 // pred_check_branch
      %279 = sbr.rel (0) target = $region33
    $region32: #{projector_forward.1} parent=1 // pred_region
      _
    $region33: #{projector_forward.1} parent=1 // pred_fallthru
      _
    %280 = vsyncpa [#allocation3], 1
    %281 = vsyncpa [#allocation5], 1

</llo_original>
